<compile_context>
chip_gen: v7x
topology: tpu7x:2x2x1
jax: 0.10.0
libtpu: 0.0.40
codegen_flags: <defaults>
</compile_context>

<pallas_src>
import functools

import jax
import jax.numpy as jnp
from jax import lax
from jax.experimental import pallas as pl
from jax.experimental.pallas import tpu as pltpu


def _relu_conv_bn_kernel(x_ref, w_ref, gb_ref, o_ref, *, stride, eps):
    """Fused ReLU -> Conv1d -> BatchNorm1d on one VMEM-resident problem.

    x_ref : (S, C_in, N, L_phase)  phase-decomposed, zero-padded input
    w_ref : (K, C_out, C_in)       conv weights, tap-major
    gb_ref: (2, C_out, 1)          [gamma; beta]
    o_ref : (N, C_out, L_out)      output in PyTorch layout
    """
    _, c_in, n_batch, _ = x_ref.shape
    k_taps, c_out, _ = w_ref.shape
    l_out = o_ref.shape[2]
    m = n_batch * l_out

    # ReLU once on the VPU.  Zero padding stays zero, so it matches
    # "ReLU then zero-padded conv" exactly.
    xa = jnp.maximum(x_ref[...], 0)
    wv = w_ref[...]

    # Conv: per-sample, per-tap small MXU matmuls accumulated in f32.
    # Tap k of stride-s conv is the contiguous slice
    #   x_phase[k % s, :, n, k // s : k // s + L_out].
    ys = []
    for n in range(n_batch):
        acc = jnp.zeros((c_out, l_out), jnp.float32)
        for k in range(k_taps):
            p, j0 = k % stride, k // stride
            tap = xa[p, :, n, j0:j0 + l_out]                    # (C_in, L_out)
            acc = acc + jnp.dot(wv[k], tap,
                                preferred_element_type=jnp.float32)
        ys.append(acc)

    # BatchNorm1d, training-mode batch statistics, biased (1/M) variance,
    # numerically-safe two-pass form.  No masking needed: every column is real.
    inv_m = 1.0 / float(m)
    mean = sum(jnp.sum(y, axis=1, keepdims=True) for y in ys) * inv_m   # (C_out,1)
    var = sum(jnp.sum((y - mean) * (y - mean), axis=1, keepdims=True)
              for y in ys) * inv_m                                      # (C_out,1)
    scale = gb_ref[0] * lax.rsqrt(var + eps)                            # (C_out,1)
    shift = gb_ref[1]                                                   # (C_out,1)

    for n in range(n_batch):
        o_ref[n] = ((ys[n] - mean) * scale + shift).astype(o_ref.dtype)


@functools.partial(jax.jit,
                   static_argnames=("stride", "padding", "eps", "mxu_dtype"))
def relu_conv_bn(x, w, gamma, beta, *, stride, padding, eps=1e-5,
                 mxu_dtype=jnp.float32):
    """Fused ReLU -> Conv1d(bias=False) -> BatchNorm1d (training batch stats).

    x: (N, C_in, L); w: (C_out, C_in, K); gamma/beta: (C_out,).
    Returns (N, C_out, L_out) like the PyTorch module.
    """
    N, C_in, L = x.shape
    C_out, _, K = w.shape
    L_pad = L + 2 * padding
    L_out = (L_pad - K) // stride + 1

    # Phase-decomposed padded input: x_phase[p, ci, n, j] = x_pad[n, ci, j*s+p].
    # Total size == |x_pad| (no K x blowup); every in-kernel tap is a
    # contiguous slice of it.  Pure layout plumbing, fused by XLA under jit.
    L_phase = max(-(-L_pad // stride), (K - 1) // stride + L_out)
    L_ext = L_phase * stride
    x_pad = jnp.pad(x, ((0, 0), (0, 0), (padding, padding + L_ext - L_pad)))
    x_phase = jnp.transpose(x_pad.reshape(N, C_in, L_phase, stride),
                            (3, 1, 0, 2)).astype(mxu_dtype)

    # Tap-major weights; gamma/beta packed into one operand (3 DMAs total).
    wk = jnp.transpose(w, (2, 0, 1)).astype(mxu_dtype)          # (K, C_out, C_in)
    gb = jnp.stack([gamma, beta], axis=0).astype(jnp.float32).reshape(2, C_out, 1)

    kernel = functools.partial(_relu_conv_bn_kernel, stride=stride, eps=eps)
    return pl.pallas_call(
        kernel,
        out_shape=jax.ShapeDtypeStruct((N, C_out, L_out), jnp.float32),
        in_specs=[pl.BlockSpec(memory_space=pltpu.MemorySpace.VMEM)
                  for _ in range(3)],
        out_specs=pl.BlockSpec(memory_space=pltpu.MemorySpace.VMEM),
    )(x_phase, wk, gb)


def _reference(x, w, gamma, beta, *, stride, padding, eps=1e-5):
    xr = jnp.maximum(x, 0.0)
    y = lax.conv_general_dilated(
        xr, w, window_strides=(stride,), padding=[(padding, padding)],
        dimension_numbers=("NCH", "OIH", "NCH"))
    mean = y.mean(axis=(0, 2), keepdims=True)
    var = ((y - mean) ** 2).mean(axis=(0, 2), keepdims=True)
    yn = (y - mean) / jnp.sqrt(var + eps)
    return yn * gamma.reshape(1, -1, 1) + beta.reshape(1, -1, 1)


if __name__ == "__main__":
    # Module config: ReLUConvBN(C_in=4, C_out=8, kernel_size=3, stride, padding=1)
    N, C_in, C_out, L, K = 2, 4, 8, 16, 3

    key = jax.random.PRNGKey(0)
    kx, kw, kg, kb = jax.random.split(key, 4)
    x = jax.random.normal(kx, (N, C_in, L), dtype=jnp.float32)
    w = jax.random.normal(kw, (C_out, C_in, K), dtype=jnp.float32) * 0.1
    gamma = 1.0 + 0.1 * jax.random.normal(kg, (C_out,), dtype=jnp.float32)
    beta = 0.1 * jax.random.normal(kb, (C_out,), dtype=jnp.float32)

    for stride, padding in ((1, 1), (2, 1)):
        out = relu_conv_bn(x, w, gamma, beta, stride=stride, padding=padding)
        out = jax.block_until_ready(out)
        ref = _reference(x, w, gamma, beta, stride=stride, padding=padding)
        L_out = (L + 2 * padding - K) // stride + 1
        assert out.shape == (N, C_out, L_out)
        assert jnp.max(jnp.abs(out - ref)) < 1e-4, "mismatch vs. JAX reference"

    print("KERNEL_OK")
</pallas_src>

<mosaic_0001>
module attributes {stable_mosaic.version = 11 : i64} {
  func.func @_relu_conv_bn_kernel(%arg0: memref<1x4x2x18xf32, #tpu.memory_space<vmem>>, %arg1: memref<3x8x4xf32, #tpu.memory_space<vmem>>, %arg2: memref<2x8x1xf32, #tpu.memory_space<vmem>>, %arg3: memref<2x8x16xf32, #tpu.memory_space<vmem>>) attributes {dimension_semantics = [], scalar_prefetch = 0 : i64, scratch_operands = 0 : i64, tpu.core_type = #tpu.core_type<tc>} {
    %c0 = arith.constant 0 : index
    %c0_0 = arith.constant 0 : index
    %c0_1 = arith.constant 0 : index
    %c0_2 = arith.constant 0 : index
    %0 = vector.load %arg0[%c0, %c0_0, %c0_1, %c0_2] : memref<1x4x2x18xf32, #tpu.memory_space<vmem>>, vector<1x4x2x18xf32>
    %cst = arith.constant 0.000000e+00 : f32
    %1 = vector.broadcast %cst : f32 to vector<1x4x2x18xf32>
    %2 = arith.maximumf %0, %1 : vector<1x4x2x18xf32>
    %c0_3 = arith.constant 0 : index
    %c0_4 = arith.constant 0 : index
    %c0_5 = arith.constant 0 : index
    %3 = vector.load %arg1[%c0_3, %c0_4, %c0_5] : memref<3x8x4xf32, #tpu.memory_space<vmem>>, vector<3x8x4xf32>
    %cst_6 = arith.constant 0.000000e+00 : f32
    %4 = vector.broadcast %cst_6 : f32 to vector<8x16xf32>
    %5 = vector.extract_strided_slice %2 {offsets = [0, 0, 0, 0], sizes = [1, 4, 1, 16], strides = [1, 1, 1, 1]} : vector<1x4x2x18xf32> to vector<1x4x1x16xf32>
    %6 = vector.shape_cast %5 : vector<1x4x1x16xf32> to vector<4x16xf32>
    %7 = vector.extract_strided_slice %3 {offsets = [0, 0, 0], sizes = [1, 8, 4], strides = [1, 1, 1]} : vector<3x8x4xf32> to vector<1x8x4xf32>
    %8 = vector.shape_cast %7 : vector<1x8x4xf32> to vector<8x4xf32>
    %cst_7 = arith.constant dense<0.000000e+00> : vector<8x16xf32>
    %9 = tpu.matmul %8, %6, %cst_7 {dimension_numbers = #tpu.dot_dimension_numbers<[1], [0], [0], [1], [0, 0, 1, 1], [], []>} : vector<8x4xf32>, vector<4x16xf32>, vector<8x16xf32> -> vector<8x16xf32>
    %10 = arith.addf %4, %9 : vector<8x16xf32>
    %11 = vector.extract_strided_slice %2 {offsets = [0, 0, 0, 1], sizes = [1, 4, 1, 16], strides = [1, 1, 1, 1]} : vector<1x4x2x18xf32> to vector<1x4x1x16xf32>
    %12 = vector.shape_cast %11 : vector<1x4x1x16xf32> to vector<4x16xf32>
    %13 = vector.extract_strided_slice %3 {offsets = [1, 0, 0], sizes = [1, 8, 4], strides = [1, 1, 1]} : vector<3x8x4xf32> to vector<1x8x4xf32>
    %14 = vector.shape_cast %13 : vector<1x8x4xf32> to vector<8x4xf32>
    %cst_8 = arith.constant dense<0.000000e+00> : vector<8x16xf32>
    %15 = tpu.matmul %14, %12, %cst_8 {dimension_numbers = #tpu.dot_dimension_numbers<[1], [0], [0], [1], [0, 0, 1, 1], [], []>} : vector<8x4xf32>, vector<4x16xf32>, vector<8x16xf32> -> vector<8x16xf32>
    %16 = arith.addf %10, %15 : vector<8x16xf32>
    %17 = vector.extract_strided_slice %2 {offsets = [0, 0, 0, 2], sizes = [1, 4, 1, 16], strides = [1, 1, 1, 1]} : vector<1x4x2x18xf32> to vector<1x4x1x16xf32>
    %18 = vector.shape_cast %17 : vector<1x4x1x16xf32> to vector<4x16xf32>
    %19 = vector.extract_strided_slice %3 {offsets = [2, 0, 0], sizes = [1, 8, 4], strides = [1, 1, 1]} : vector<3x8x4xf32> to vector<1x8x4xf32>
    %20 = vector.shape_cast %19 : vector<1x8x4xf32> to vector<8x4xf32>
    %cst_9 = arith.constant dense<0.000000e+00> : vector<8x16xf32>
    %21 = tpu.matmul %20, %18, %cst_9 {dimension_numbers = #tpu.dot_dimension_numbers<[1], [0], [0], [1], [0, 0, 1, 1], [], []>} : vector<8x4xf32>, vector<4x16xf32>, vector<8x16xf32> -> vector<8x16xf32>
    %22 = arith.addf %16, %21 : vector<8x16xf32>
    %cst_10 = arith.constant 0.000000e+00 : f32
    %23 = vector.broadcast %cst_10 : f32 to vector<8x16xf32>
    %24 = vector.extract_strided_slice %2 {offsets = [0, 0, 1, 0], sizes = [1, 4, 1, 16], strides = [1, 1, 1, 1]} : vector<1x4x2x18xf32> to vector<1x4x1x16xf32>
    %25 = vector.shape_cast %24 : vector<1x4x1x16xf32> to vector<4x16xf32>
    %26 = vector.extract_strided_slice %3 {offsets = [0, 0, 0], sizes = [1, 8, 4], strides = [1, 1, 1]} : vector<3x8x4xf32> to vector<1x8x4xf32>
    %27 = vector.shape_cast %26 : vector<1x8x4xf32> to vector<8x4xf32>
    %cst_11 = arith.constant dense<0.000000e+00> : vector<8x16xf32>
    %28 = tpu.matmul %27, %25, %cst_11 {dimension_numbers = #tpu.dot_dimension_numbers<[1], [0], [0], [1], [0, 0, 1, 1], [], []>} : vector<8x4xf32>, vector<4x16xf32>, vector<8x16xf32> -> vector<8x16xf32>
    %29 = arith.addf %23, %28 : vector<8x16xf32>
    %30 = vector.extract_strided_slice %2 {offsets = [0, 0, 1, 1], sizes = [1, 4, 1, 16], strides = [1, 1, 1, 1]} : vector<1x4x2x18xf32> to vector<1x4x1x16xf32>
    %31 = vector.shape_cast %30 : vector<1x4x1x16xf32> to vector<4x16xf32>
    %32 = vector.extract_strided_slice %3 {offsets = [1, 0, 0], sizes = [1, 8, 4], strides = [1, 1, 1]} : vector<3x8x4xf32> to vector<1x8x4xf32>
    %33 = vector.shape_cast %32 : vector<1x8x4xf32> to vector<8x4xf32>
    %cst_12 = arith.constant dense<0.000000e+00> : vector<8x16xf32>
    %34 = tpu.matmul %33, %31, %cst_12 {dimension_numbers = #tpu.dot_dimension_numbers<[1], [0], [0], [1], [0, 0, 1, 1], [], []>} : vector<8x4xf32>, vector<4x16xf32>, vector<8x16xf32> -> vector<8x16xf32>
    %35 = arith.addf %29, %34 : vector<8x16xf32>
    %36 = vector.extract_strided_slice %2 {offsets = [0, 0, 1, 2], sizes = [1, 4, 1, 16], strides = [1, 1, 1, 1]} : vector<1x4x2x18xf32> to vector<1x4x1x16xf32>
    %37 = vector.shape_cast %36 : vector<1x4x1x16xf32> to vector<4x16xf32>
    %38 = vector.extract_strided_slice %3 {offsets = [2, 0, 0], sizes = [1, 8, 4], strides = [1, 1, 1]} : vector<3x8x4xf32> to vector<1x8x4xf32>
    %39 = vector.shape_cast %38 : vector<1x8x4xf32> to vector<8x4xf32>
    %cst_13 = arith.constant dense<0.000000e+00> : vector<8x16xf32>
    %40 = tpu.matmul %39, %37, %cst_13 {dimension_numbers = #tpu.dot_dimension_numbers<[1], [0], [0], [1], [0, 0, 1, 1], [], []>} : vector<8x4xf32>, vector<4x16xf32>, vector<8x16xf32> -> vector<8x16xf32>
    %41 = arith.addf %35, %40 : vector<8x16xf32>
    %cst_14 = arith.constant dense<0.000000e+00> : vector<8xf32>
    %42 = vector.multi_reduction <add>, %22, %cst_14 [1] : vector<8x16xf32> to vector<8xf32>
    %43 = vector.shape_cast %42 : vector<8xf32> to vector<8x1xf32>
    %cst_15 = arith.constant 0.000000e+00 : f32
    %44 = vector.broadcast %cst_15 : f32 to vector<8x1xf32>
    %45 = arith.addf %44, %43 : vector<8x1xf32>
    %cst_16 = arith.constant dense<0.000000e+00> : vector<8xf32>
    %46 = vector.multi_reduction <add>, %41, %cst_16 [1] : vector<8x16xf32> to vector<8xf32>
    %47 = vector.shape_cast %46 : vector<8xf32> to vector<8x1xf32>
    %48 = arith.addf %45, %47 : vector<8x1xf32>
    %cst_17 = arith.constant 3.125000e-02 : f32
    %49 = vector.broadcast %cst_17 : f32 to vector<8x1xf32>
    %50 = arith.mulf %48, %49 : vector<8x1xf32>
    %51 = vector.broadcast %50 : vector<8x1xf32> to vector<8x16xf32>
    %52 = arith.subf %22, %51 : vector<8x16xf32>
    %53 = vector.broadcast %50 : vector<8x1xf32> to vector<8x16xf32>
    %54 = arith.subf %22, %53 : vector<8x16xf32>
    %55 = arith.mulf %52, %54 : vector<8x16xf32>
    %cst_18 = arith.constant dense<0.000000e+00> : vector<8xf32>
    %56 = vector.multi_reduction <add>, %55, %cst_18 [1] : vector<8x16xf32> to vector<8xf32>
    %57 = vector.shape_cast %56 : vector<8xf32> to vector<8x1xf32>
    %cst_19 = arith.constant 0.000000e+00 : f32
    %58 = vector.broadcast %cst_19 : f32 to vector<8x1xf32>
    %59 = arith.addf %58, %57 : vector<8x1xf32>
    %60 = vector.broadcast %50 : vector<8x1xf32> to vector<8x16xf32>
    %61 = arith.subf %41, %60 : vector<8x16xf32>
    %62 = vector.broadcast %50 : vector<8x1xf32> to vector<8x16xf32>
    %63 = arith.subf %41, %62 : vector<8x16xf32>
    %64 = arith.mulf %61, %63 : vector<8x16xf32>
    %cst_20 = arith.constant dense<0.000000e+00> : vector<8xf32>
    %65 = vector.multi_reduction <add>, %64, %cst_20 [1] : vector<8x16xf32> to vector<8xf32>
    %66 = vector.shape_cast %65 : vector<8xf32> to vector<8x1xf32>
    %67 = arith.addf %59, %66 : vector<8x1xf32>
    %cst_21 = arith.constant 3.125000e-02 : f32
    %68 = vector.broadcast %cst_21 : f32 to vector<8x1xf32>
    %69 = arith.mulf %67, %68 : vector<8x1xf32>
    %c0_22 = arith.constant 0 : index
    %c0_23 = arith.constant 0 : index
    %c0_24 = arith.constant 0 : index
    %70 = vector.load %arg2[%c0_22, %c0_23, %c0_24] : memref<2x8x1xf32, #tpu.memory_space<vmem>>, vector<1x8x1xf32>
    %71 = vector.shape_cast %70 : vector<1x8x1xf32> to vector<8x1xf32>
    %cst_25 = arith.constant 9.99999974E-6 : f32
    %72 = vector.broadcast %cst_25 : f32 to vector<8x1xf32>
    %73 = arith.addf %69, %72 : vector<8x1xf32>
    %74 = math.rsqrt %73 : vector<8x1xf32>
    %75 = arith.mulf %71, %74 : vector<8x1xf32>
    %c1 = arith.constant 1 : index
    %c0_26 = arith.constant 0 : index
    %c0_27 = arith.constant 0 : index
    %76 = vector.load %arg2[%c1, %c0_26, %c0_27] : memref<2x8x1xf32, #tpu.memory_space<vmem>>, vector<1x8x1xf32>
    %77 = vector.shape_cast %76 : vector<1x8x1xf32> to vector<8x1xf32>
    %78 = vector.broadcast %50 : vector<8x1xf32> to vector<8x16xf32>
    %79 = arith.subf %22, %78 : vector<8x16xf32>
    %80 = vector.broadcast %75 : vector<8x1xf32> to vector<8x16xf32>
    %81 = arith.mulf %79, %80 : vector<8x16xf32>
    %82 = vector.broadcast %77 : vector<8x1xf32> to vector<8x16xf32>
    %83 = arith.addf %81, %82 : vector<8x16xf32>
    %c0_28 = arith.constant 0 : index
    %c0_29 = arith.constant 0 : index
    %c0_30 = arith.constant 0 : index
    %84 = vector.load %arg3[%c0_28, %c0_29, %c0_30] : memref<2x8x16xf32, #tpu.memory_space<vmem>>, vector<1x8x16xf32>
    %85 = vector.shape_cast %84 : vector<1x8x16xf32> to vector<8x16xf32>
    %86 = vector.shape_cast %83 : vector<8x16xf32> to vector<1x8x16xf32>
    tpu.vector_store %arg3[%c0_28, %c0_29, %c0_30], %86 {strides = array<i32>} : memref<2x8x16xf32, #tpu.memory_space<vmem>>, vector<1x8x16xf32>,
    %87 = vector.broadcast %50 : vector<8x1xf32> to vector<8x16xf32>
    %88 = arith.subf %41, %87 : vector<8x16xf32>
    %89 = vector.broadcast %75 : vector<8x1xf32> to vector<8x16xf32>
    %90 = arith.mulf %88, %89 : vector<8x16xf32>
    %91 = vector.broadcast %77 : vector<8x1xf32> to vector<8x16xf32>
    %92 = arith.addf %90, %91 : vector<8x16xf32>
    %c1_31 = arith.constant 1 : index
    %c0_32 = arith.constant 0 : index
    %c0_33 = arith.constant 0 : index
    %93 = vector.load %arg3[%c1_31, %c0_32, %c0_33] : memref<2x8x16xf32, #tpu.memory_space<vmem>>, vector<1x8x16xf32>
    %94 = vector.shape_cast %93 : vector<1x8x16xf32> to vector<8x16xf32>
    %95 = vector.shape_cast %92 : vector<8x16xf32> to vector<1x8x16xf32>
    tpu.vector_store %arg3[%c1_31, %c0_32, %c0_33], %95 {strides = array<i32>} : memref<2x8x16xf32, #tpu.memory_space<vmem>>, vector<1x8x16xf32>,
    return
  }
}

</mosaic_0001>

<llo_original>
// kernel: relu_conv_bn.1
$region0: #{relu_conv_bn.1}
  #allocation0 [shape = 'u32[]', space=smem, size = 0x4, offset = 0x4, fixed_abs, tag = 'smem constant byte address 0x4 - core index']
  #allocation1 [shape = 'u32[144,128]{1,0:T(1,128)}', space=vmem, size = 0x12000, scoped, tag = 'internal scratch']
  %s0 = inlined_call_operand.vmem [shape: f32[1,4,2,18], index: 0, kind: input, shape index: {}]
  %s1 = inlined_call_operand.vmem [shape: f32[3,8,4], index: 1, kind: input, shape index: {}]
  %s2 = inlined_call_operand.vmem [shape: f32[2,8,1], index: 2, kind: input, shape index: {}]
  %s3 = inlined_call_operand.hbm [shape: f32[2,8,16], index: 3, kind: output, shape index: {}]
  %s4 = sld [smem:[#allocation0]]
  $region22: #{relu_conv_bn.1} parent=0
    _
  %s6 = ssub.s32 1, %s4
  %s7 = scalar_select 0, %s6, %s4
  $region1: #{relu_conv_bn.1} parent=0
    #allocation2 [shape = 'u8[8192]{0}', space=vmem, size = 0x2000, scoped, tag = 'output window, operand 0, single buffered']
    #allocation3 [shape = 's32[1]{0}', space=sflag, size = 0x4, scoped, tag = 'scoped memory for relu_conv_bn.1']
    %8 = vsyncpa [#allocation3], 0
    // Predicated region
    $region2: #{relu_conv_bn.1} parent=1 // pred_check
      _
    $region3: #{relu_conv_bn.1} parent=1 // pred_check_branch
      %10 = sbr.rel (0) target = $region5
    $region4: #{relu_conv_bn.1} parent=1 // pred_region
      _
    $region5: #{relu_conv_bn.1} parent=1 // pred_fallthru
      _
    // Predicated region
    $region6: #{relu_conv_bn.1} parent=1 // pred_check
      _
    $region7: #{relu_conv_bn.1} parent=1 // pred_check_branch
      %12 = sbr.rel (0) target = $region9
    $region8: #{relu_conv_bn.1} parent=1 // pred_region
      _
    $region9: #{relu_conv_bn.1} parent=1 // pred_fallthru
      _
    // Predicated region
    $region10: #{relu_conv_bn.1} parent=1 // pred_check
      _
    $region11: #{relu_conv_bn.1} parent=1 // pred_check_branch
      %14 = sbr.rel (0) target = $region13
    $region12: #{relu_conv_bn.1} parent=1 // pred_region
      _
    $region13: #{relu_conv_bn.1} parent=1 // pred_fallthru
      _
    %v15 = vld [vmem:[%s0] sm:$0x3]
    %v16 = vld [vmem:[%s0 + $0x2] sm:$0x3]
    %v17 = vld [vmem:[%s0 + $0x4] sm:$0x3]
    %v18 = vld [vmem:[%s0 + $0x6] sm:$0x3]
    %v19 = vmax.f32 %v15, 0.0
    %v20 = vmax.f32 %v16, 0.0
    %v21 = vmax.f32 %v17, 0.0
    %v22 = vmax.f32 %v18, 0.0
    %v23 = vld [vmem:[%s1] sm:$0xff]
    %v24 = vld [vmem:[%s1 + $0x8] sm:$0xff]
    %v25 = vld [vmem:[%s1 + $0x10] sm:$0xff]
    %v30 = vrot.slane %v20, 7
    %vm31 = vcmask 1041409
    %v32 = vsel %vm31, %v30, %v19
    %v33 = vrot.slane %v21, 6
    %vm34 = vcmask 1042434
    %v35 = vsel %vm34, %v33, %v32
    %v36 = vrot.slane %v22, 5
    %vm37 = vcmask 1043459
    %v38 = vsel %vm37, %v36, %v35
    %39 = vrot.lane.b32.xlu0 %v38, 127
    %v40 = vpop.permute.xlu0 %39
    %vm41 = vcmask 31744
    %v43 = vsel %vm41, %v24, 0
    %vm45 = vcmask 1043456
    %v46 = vsel %vm45, %v40, 0
    %48 = vmatprep.subr.mxu0 0.0
    %49 = vmatpush1.msra.mxu0 %v46
    %50 = vmatprep.subr.mxu0 0.0
    %51 = vmatpush1.msra.mxu0 0.0
    %52 = vmatprep.subr.mxu0 0.0
    %53 = vmatpush1.msra.mxu0 0.0
    %54 = vmatprep.subr.mxu0 0.0
    %55 = vmatpush1.msra.mxu0 0.0
    %56 = vmatprep.subr.mxu0 0.0
    %57 = vmatpush1.msra.mxu0 0.0
    %58 = vmatprep.subr.mxu0 0.0
    %59 = vmatpush1.msra.mxu0 0.0
    %60 = vmatprep.subr.mxu0 0.0
    %61 = vmatpush1.msra.mxu0 0.0
    %62 = vmatprep.subr.mxu0 0.0
    %63 = vmatpush1.msra.mxu0 0.0
    %64 = vmatprep.subr.mxu0 0.0
    %65 = vmatpush1.msra.mxu0 0.0
    %66 = vmatprep.subr.mxu0 0.0
    %67 = vmatpush1.msra.mxu0 0.0
    %68 = vmatprep.subr.mxu0 0.0
    %69 = vmatpush1.msra.mxu0 0.0
    %70 = vmatprep.subr.mxu0 0.0
    %71 = vmatpush1.msra.mxu0 0.0
    %72 = vmatprep.subr.mxu0 0.0
    %73 = vmatpush1.msra.mxu0 0.0
    %74 = vmatprep.subr.mxu0 0.0
    %75 = vmatpush1.msra.mxu0 0.0
    %76 = vmatprep.subr.mxu0 0.0
    %77 = vmatpush1.msra.mxu0 0.0
    %78 = vmatprep.subr.mxu0 0.0
    %79 = vmatpush1.msra.mxu0 0.0
    %80 = vmatprep.subr.mxu0 0.0
    %81 = vmatpush1.msra.mxu0 0.0
    %82 = vmatprep.subr.mxu0 0.0
    %83 = vmatpush1.msra.mxu0 0.0
    %84 = vmatprep.subr.mxu0 0.0
    %85 = vmatpush1.msra.mxu0 0.0
    %86 = vmatprep.subr.mxu0 0.0
    %87 = vmatpush1.msra.mxu0 0.0
    %88 = vmatprep.subr.mxu0 0.0
    %89 = vmatpush1.msra.mxu0 0.0
    %90 = vmatprep.subr.mxu0 0.0
    %91 = vmatpush1.msra.mxu0 0.0
    %92 = vmatprep.subr.mxu0 0.0
    %93 = vmatpush1.msra.mxu0 0.0
    %94 = vmatprep.subr.mxu0 0.0
    %95 = vmatpush1.msra.mxu0 0.0
    %96 = vmatprep.subr.mxu0 0.0
    %97 = vmatpush1.msra.mxu0 0.0
    %98 = vmatprep.subr.mxu0 0.0
    %99 = vmatpush1.msra.mxu0 0.0
    %100 = vmatprep.subr.mxu0 0.0
    %101 = vmatpush1.msra.mxu0 0.0
    %102 = vmatprep.subr.mxu0 0.0
    %103 = vmatpush1.msra.mxu0 0.0
    %104 = vmatprep.subr.mxu0 0.0
    %105 = vmatpush1.msra.mxu0 0.0
    %106 = vmatprep.subr.mxu0 0.0
    %107 = vmatpush1.msra.mxu0 0.0
    %108 = vmatprep.subr.mxu0 0.0
    %109 = vmatpush1.msra.mxu0 0.0
    %110 = vmatprep.subr.mxu0 0.0
    %111 = vmatpush1.msra.mxu0 0.0
    %112 = vmatprep.mubr.f32.mxu0 0.0
    %113 = vmatmul.mubr.f32.gmra.mrb[0].mxu0 %v43
    %v114 = vpop.f32.mrb[0].mxu0
    %v115 = vadd.f32 0.0, %v114
    %v116 = vpop.f32.mrb[0].mxu0
    %117 = vdwg.mxu0
    %v119 = vsel %vm41, %v23, 0
    %v121 = vsel %vm45, %v38, 0
    %123 = vmatprep.subr.mxu0 0.0
    %124 = vmatpush1.msra.mxu0 %v121
    %125 = vmatprep.subr.mxu0 0.0
    %126 = vmatpush1.msra.mxu0 0.0
    %127 = vmatprep.subr.mxu0 0.0
    %128 = vmatpush1.msra.mxu0 0.0
    %129 = vmatprep.subr.mxu0 0.0
    %130 = vmatpush1.msra.mxu0 0.0
    %131 = vmatprep.subr.mxu0 0.0
    %132 = vmatpush1.msra.mxu0 0.0
    %133 = vmatprep.subr.mxu0 0.0
    %134 = vmatpush1.msra.mxu0 0.0
    %135 = vmatprep.subr.mxu0 0.0
    %136 = vmatpush1.msra.mxu0 0.0
    %137 = vmatprep.subr.mxu0 0.0
    %138 = vmatpush1.msra.mxu0 0.0
    %139 = vmatprep.subr.mxu0 0.0
    %140 = vmatpush1.msra.mxu0 0.0
    %141 = vmatprep.subr.mxu0 0.0
    %142 = vmatpush1.msra.mxu0 0.0
    %143 = vmatprep.subr.mxu0 0.0
    %144 = vmatpush1.msra.mxu0 0.0
    %145 = vmatprep.subr.mxu0 0.0
    %146 = vmatpush1.msra.mxu0 0.0
    %147 = vmatprep.subr.mxu0 0.0
    %148 = vmatpush1.msra.mxu0 0.0
    %149 = vmatprep.subr.mxu0 0.0
    %150 = vmatpush1.msra.mxu0 0.0
    %151 = vmatprep.subr.mxu0 0.0
    %152 = vmatpush1.msra.mxu0 0.0
    %153 = vmatprep.subr.mxu0 0.0
    %154 = vmatpush1.msra.mxu0 0.0
    %155 = vmatprep.subr.mxu0 0.0
    %156 = vmatpush1.msra.mxu0 0.0
    %157 = vmatprep.subr.mxu0 0.0
    %158 = vmatpush1.msra.mxu0 0.0
    %159 = vmatprep.subr.mxu0 0.0
    %160 = vmatpush1.msra.mxu0 0.0
    %161 = vmatprep.subr.mxu0 0.0
    %162 = vmatpush1.msra.mxu0 0.0
    %163 = vmatprep.subr.mxu0 0.0
    %164 = vmatpush1.msra.mxu0 0.0
    %165 = vmatprep.subr.mxu0 0.0
    %166 = vmatpush1.msra.mxu0 0.0
    %167 = vmatprep.subr.mxu0 0.0
    %168 = vmatpush1.msra.mxu0 0.0
    %169 = vmatprep.subr.mxu0 0.0
    %170 = vmatpush1.msra.mxu0 0.0
    %171 = vmatprep.subr.mxu0 0.0
    %172 = vmatpush1.msra.mxu0 0.0
    %173 = vmatprep.subr.mxu0 0.0
    %174 = vmatpush1.msra.mxu0 0.0
    %175 = vmatprep.subr.mxu0 0.0
    %176 = vmatpush1.msra.mxu0 0.0
    %177 = vmatprep.subr.mxu0 0.0
    %178 = vmatpush1.msra.mxu0 0.0
    %179 = vmatprep.subr.mxu0 0.0
    %180 = vmatpush1.msra.mxu0 0.0
    %181 = vmatprep.subr.mxu0 0.0
    %182 = vmatpush1.msra.mxu0 0.0
    %183 = vmatprep.subr.mxu0 0.0
    %184 = vmatpush1.msra.mxu0 0.0
    %185 = vmatprep.subr.mxu0 0.0
    %186 = vmatpush1.msra.mxu0 0.0
    %187 = vmatprep.mubr.f32.mxu0 0.0
    %188 = vmatmul.mubr.f32.gmra.mrb[0].mxu0 %v119
    %v189 = vpop.f32.mrb[0].mxu0
    %v190 = vadd.f32 %v115, %v189
    %v191 = vpop.f32.mrb[0].mxu0
    %192 = vdwg.mxu0
    %193 = vrot.lane.b32.xlu0 %v38, 126
    %v194 = vpop.permute.xlu0 %193
    %v196 = vsel %vm41, %v25, 0
    %v198 = vsel %vm45, %v194, 0
    %200 = vmatprep.subr.mxu0 0.0
    %201 = vmatpush1.msra.mxu0 %v198
    %202 = vmatprep.subr.mxu0 0.0
    %203 = vmatpush1.msra.mxu0 0.0
    %204 = vmatprep.subr.mxu0 0.0
    %205 = vmatpush1.msra.mxu0 0.0
    %206 = vmatprep.subr.mxu0 0.0
    %207 = vmatpush1.msra.mxu0 0.0
    %208 = vmatprep.subr.mxu0 0.0
    %209 = vmatpush1.msra.mxu0 0.0
    %210 = vmatprep.subr.mxu0 0.0
    %211 = vmatpush1.msra.mxu0 0.0
    %212 = vmatprep.subr.mxu0 0.0
    %213 = vmatpush1.msra.mxu0 0.0
    %214 = vmatprep.subr.mxu0 0.0
    %215 = vmatpush1.msra.mxu0 0.0
    %216 = vmatprep.subr.mxu0 0.0
    %217 = vmatpush1.msra.mxu0 0.0
    %218 = vmatprep.subr.mxu0 0.0
    %219 = vmatpush1.msra.mxu0 0.0
    %220 = vmatprep.subr.mxu0 0.0
    %221 = vmatpush1.msra.mxu0 0.0
    %222 = vmatprep.subr.mxu0 0.0
    %223 = vmatpush1.msra.mxu0 0.0
    %224 = vmatprep.subr.mxu0 0.0
    %225 = vmatpush1.msra.mxu0 0.0
    %226 = vmatprep.subr.mxu0 0.0
    %227 = vmatpush1.msra.mxu0 0.0
    %228 = vmatprep.subr.mxu0 0.0
    %229 = vmatpush1.msra.mxu0 0.0
    %230 = vmatprep.subr.mxu0 0.0
    %231 = vmatpush1.msra.mxu0 0.0
    %232 = vmatprep.subr.mxu0 0.0
    %233 = vmatpush1.msra.mxu0 0.0
    %234 = vmatprep.subr.mxu0 0.0
    %235 = vmatpush1.msra.mxu0 0.0
    %236 = vmatprep.subr.mxu0 0.0
    %237 = vmatpush1.msra.mxu0 0.0
    %238 = vmatprep.subr.mxu0 0.0
    %239 = vmatpush1.msra.mxu0 0.0
    %240 = vmatprep.subr.mxu0 0.0
    %241 = vmatpush1.msra.mxu0 0.0
    %242 = vmatprep.subr.mxu0 0.0
    %243 = vmatpush1.msra.mxu0 0.0
    %244 = vmatprep.subr.mxu0 0.0
    %245 = vmatpush1.msra.mxu0 0.0
    %246 = vmatprep.subr.mxu0 0.0
    %247 = vmatpush1.msra.mxu0 0.0
    %248 = vmatprep.subr.mxu0 0.0
    %249 = vmatpush1.msra.mxu0 0.0
    %250 = vmatprep.subr.mxu0 0.0
    %251 = vmatpush1.msra.mxu0 0.0
    %252 = vmatprep.subr.mxu0 0.0
    %253 = vmatpush1.msra.mxu0 0.0
    %254 = vmatprep.subr.mxu0 0.0
    %255 = vmatpush1.msra.mxu0 0.0
    %256 = vmatprep.subr.mxu0 0.0
    %257 = vmatpush1.msra.mxu0 0.0
    %258 = vmatprep.subr.mxu0 0.0
    %259 = vmatpush1.msra.mxu0 0.0
    %260 = vmatprep.subr.mxu0 0.0
    %261 = vmatpush1.msra.mxu0 0.0
    %262 = vmatprep.subr.mxu0 0.0
    %263 = vmatpush1.msra.mxu0 0.0
    %264 = vmatprep.mubr.f32.mxu0 0.0
    %265 = vmatmul.mubr.f32.gmra.mrb[0].mxu0 %v196
    %v266 = vpop.f32.mrb[0].mxu0
    %v267 = vadd.f32 0.0, %v266
    %v268 = vpop.f32.mrb[0].mxu0
    %269 = vdwg.mxu0
    %v270 = vadd.f32 %v190, %v267
    %v271 = vrot.slane %v19, 1
    %v272 = vsel %vm31, %v20, %v271
    %v273 = vrot.slane %v21, 7
    %v274 = vsel %vm34, %v273, %v272
    %v275 = vrot.slane %v22, 6
    %v276 = vsel %vm37, %v275, %v274
    %277 = vrot.lane.b32.xlu0 %v276, 127
    %v278 = vpop.permute.xlu0 %277
    %v279 = vsel %vm45, %v278, 0
    %281 = vmatprep.subr.mxu0 0.0
    %282 = vmatpush1.msra.mxu0 %v279
    %283 = vmatprep.subr.mxu0 0.0
    %284 = vmatpush1.msra.mxu0 0.0
    %285 = vmatprep.subr.mxu0 0.0
    %286 = vmatpush1.msra.mxu0 0.0
    %287 = vmatprep.subr.mxu0 0.0
    %288 = vmatpush1.msra.mxu0 0.0
    %289 = vmatprep.subr.mxu0 0.0
    %290 = vmatpush1.msra.mxu0 0.0
    %291 = vmatprep.subr.mxu0 0.0
    %292 = vmatpush1.msra.mxu0 0.0
    %293 = vmatprep.subr.mxu0 0.0
    %294 = vmatpush1.msra.mxu0 0.0
    %295 = vmatprep.subr.mxu0 0.0
    %296 = vmatpush1.msra.mxu0 0.0
    %297 = vmatprep.subr.mxu0 0.0
    %298 = vmatpush1.msra.mxu0 0.0
    %299 = vmatprep.subr.mxu0 0.0
    %300 = vmatpush1.msra.mxu0 0.0
    %301 = vmatprep.subr.mxu0 0.0
    %302 = vmatpush1.msra.mxu0 0.0
    %303 = vmatprep.subr.mxu0 0.0
    %304 = vmatpush1.msra.mxu0 0.0
    %305 = vmatprep.subr.mxu0 0.0
    %306 = vmatpush1.msra.mxu0 0.0
    %307 = vmatprep.subr.mxu0 0.0
    %308 = vmatpush1.msra.mxu0 0.0
    %309 = vmatprep.subr.mxu0 0.0
    %310 = vmatpush1.msra.mxu0 0.0
    %311 = vmatprep.subr.mxu0 0.0
    %312 = vmatpush1.msra.mxu0 0.0
    %313 = vmatprep.subr.mxu0 0.0
    %314 = vmatpush1.msra.mxu0 0.0
    %315 = vmatprep.subr.mxu0 0.0
    %316 = vmatpush1.msra.mxu0 0.0
    %317 = vmatprep.subr.mxu0 0.0
    %318 = vmatpush1.msra.mxu0 0.0
    %319 = vmatprep.subr.mxu0 0.0
    %320 = vmatpush1.msra.mxu0 0.0
    %321 = vmatprep.subr.mxu0 0.0
    %322 = vmatpush1.msra.mxu0 0.0
    %323 = vmatprep.subr.mxu0 0.0
    %324 = vmatpush1.msra.mxu0 0.0
    %325 = vmatprep.subr.mxu0 0.0
    %326 = vmatpush1.msra.mxu0 0.0
    %327 = vmatprep.subr.mxu0 0.0
    %328 = vmatpush1.msra.mxu0 0.0
    %329 = vmatprep.subr.mxu0 0.0
    %330 = vmatpush1.msra.mxu0 0.0
    %331 = vmatprep.subr.mxu0 0.0
    %332 = vmatpush1.msra.mxu0 0.0
    %333 = vmatprep.subr.mxu0 0.0
    %334 = vmatpush1.msra.mxu0 0.0
    %335 = vmatprep.subr.mxu0 0.0
    %336 = vmatpush1.msra.mxu0 0.0
    %337 = vmatprep.subr.mxu0 0.0
    %338 = vmatpush1.msra.mxu0 0.0
    %339 = vmatprep.subr.mxu0 0.0
    %340 = vmatpush1.msra.mxu0 0.0
    %341 = vmatprep.subr.mxu0 0.0
    %342 = vmatpush1.msra.mxu0 0.0
    %343 = vmatprep.subr.mxu0 0.0
    %344 = vmatpush1.msra.mxu0 0.0
    %345 = vmatprep.mubr.f32.mxu0 0.0
    %346 = vmatmul.mubr.f32.gmra.mrb[0].mxu0 %v43
    %v347 = vpop.f32.mrb[0].mxu0
    %v348 = vadd.f32 0.0, %v347
    %v349 = vpop.f32.mrb[0].mxu0
    %350 = vdwg.mxu0
    %v351 = vsel %vm45, %v276, 0
    %353 = vmatprep.subr.mxu0 0.0
    %354 = vmatpush1.msra.mxu0 %v351
    %355 = vmatprep.subr.mxu0 0.0
    %356 = vmatpush1.msra.mxu0 0.0
    %357 = vmatprep.subr.mxu0 0.0
    %358 = vmatpush1.msra.mxu0 0.0
    %359 = vmatprep.subr.mxu0 0.0
    %360 = vmatpush1.msra.mxu0 0.0
    %361 = vmatprep.subr.mxu0 0.0
    %362 = vmatpush1.msra.mxu0 0.0
    %363 = vmatprep.subr.mxu0 0.0
    %364 = vmatpush1.msra.mxu0 0.0
    %365 = vmatprep.subr.mxu0 0.0
    %366 = vmatpush1.msra.mxu0 0.0
    %367 = vmatprep.subr.mxu0 0.0
    %368 = vmatpush1.msra.mxu0 0.0
    %369 = vmatprep.subr.mxu0 0.0
    %370 = vmatpush1.msra.mxu0 0.0
    %371 = vmatprep.subr.mxu0 0.0
    %372 = vmatpush1.msra.mxu0 0.0
    %373 = vmatprep.subr.mxu0 0.0
    %374 = vmatpush1.msra.mxu0 0.0
    %375 = vmatprep.subr.mxu0 0.0
    %376 = vmatpush1.msra.mxu0 0.0
    %377 = vmatprep.subr.mxu0 0.0
    %378 = vmatpush1.msra.mxu0 0.0
    %379 = vmatprep.subr.mxu0 0.0
    %380 = vmatpush1.msra.mxu0 0.0
    %381 = vmatprep.subr.mxu0 0.0
    %382 = vmatpush1.msra.mxu0 0.0
    %383 = vmatprep.subr.mxu0 0.0
    %384 = vmatpush1.msra.mxu0 0.0
    %385 = vmatprep.subr.mxu0 0.0
    %386 = vmatpush1.msra.mxu0 0.0
    %387 = vmatprep.subr.mxu0 0.0
    %388 = vmatpush1.msra.mxu0 0.0
    %389 = vmatprep.subr.mxu0 0.0
    %390 = vmatpush1.msra.mxu0 0.0
    %391 = vmatprep.subr.mxu0 0.0
    %392 = vmatpush1.msra.mxu0 0.0
    %393 = vmatprep.subr.mxu0 0.0
    %394 = vmatpush1.msra.mxu0 0.0
    %395 = vmatprep.subr.mxu0 0.0
    %396 = vmatpush1.msra.mxu0 0.0
    %397 = vmatprep.subr.mxu0 0.0
    %398 = vmatpush1.msra.mxu0 0.0
    %399 = vmatprep.subr.mxu0 0.0
    %400 = vmatpush1.msra.mxu0 0.0
    %401 = vmatprep.subr.mxu0 0.0
    %402 = vmatpush1.msra.mxu0 0.0
    %403 = vmatprep.subr.mxu0 0.0
    %404 = vmatpush1.msra.mxu0 0.0
    %405 = vmatprep.subr.mxu0 0.0
    %406 = vmatpush1.msra.mxu0 0.0
    %407 = vmatprep.subr.mxu0 0.0
    %408 = vmatpush1.msra.mxu0 0.0
    %409 = vmatprep.subr.mxu0 0.0
    %410 = vmatpush1.msra.mxu0 0.0
    %411 = vmatprep.subr.mxu0 0.0
    %412 = vmatpush1.msra.mxu0 0.0
    %413 = vmatprep.subr.mxu0 0.0
    %414 = vmatpush1.msra.mxu0 0.0
    %415 = vmatprep.subr.mxu0 0.0
    %416 = vmatpush1.msra.mxu0 0.0
    %417 = vmatprep.mubr.f32.mxu0 0.0
    %418 = vmatmul.mubr.f32.gmra.mrb[0].mxu0 %v119
    %v419 = vpop.f32.mrb[0].mxu0
    %v420 = vadd.f32 %v348, %v419
    %v421 = vpop.f32.mrb[0].mxu0
    %422 = vdwg.mxu0
    %423 = vrot.lane.b32.xlu0 %v276, 126
    %v424 = vpop.permute.xlu0 %423
    %v425 = vsel %vm45, %v424, 0
    %427 = vmatprep.subr.mxu0 0.0
    %428 = vmatpush1.msra.mxu0 %v425
    %429 = vmatprep.subr.mxu0 0.0
    %430 = vmatpush1.msra.mxu0 0.0
    %431 = vmatprep.subr.mxu0 0.0
    %432 = vmatpush1.msra.mxu0 0.0
    %433 = vmatprep.subr.mxu0 0.0
    %434 = vmatpush1.msra.mxu0 0.0
    %435 = vmatprep.subr.mxu0 0.0
    %436 = vmatpush1.msra.mxu0 0.0
    %437 = vmatprep.subr.mxu0 0.0
    %438 = vmatpush1.msra.mxu0 0.0
    %439 = vmatprep.subr.mxu0 0.0
    %440 = vmatpush1.msra.mxu0 0.0
    %441 = vmatprep.subr.mxu0 0.0
    %442 = vmatpush1.msra.mxu0 0.0
    %443 = vmatprep.subr.mxu0 0.0
    %444 = vmatpush1.msra.mxu0 0.0
    %445 = vmatprep.subr.mxu0 0.0
    %446 = vmatpush1.msra.mxu0 0.0
    %447 = vmatprep.subr.mxu0 0.0
    %448 = vmatpush1.msra.mxu0 0.0
    %449 = vmatprep.subr.mxu0 0.0
    %450 = vmatpush1.msra.mxu0 0.0
    %451 = vmatprep.subr.mxu0 0.0
    %452 = vmatpush1.msra.mxu0 0.0
    %453 = vmatprep.subr.mxu0 0.0
    %454 = vmatpush1.msra.mxu0 0.0
    %455 = vmatprep.subr.mxu0 0.0
    %456 = vmatpush1.msra.mxu0 0.0
    %457 = vmatprep.subr.mxu0 0.0
    %458 = vmatpush1.msra.mxu0 0.0
    %459 = vmatprep.subr.mxu0 0.0
    %460 = vmatpush1.msra.mxu0 0.0
    %461 = vmatprep.subr.mxu0 0.0
    %462 = vmatpush1.msra.mxu0 0.0
    %463 = vmatprep.subr.mxu0 0.0
    %464 = vmatpush1.msra.mxu0 0.0
    %465 = vmatprep.subr.mxu0 0.0
    %466 = vmatpush1.msra.mxu0 0.0
    %467 = vmatprep.subr.mxu0 0.0
    %468 = vmatpush1.msra.mxu0 0.0
    %469 = vmatprep.subr.mxu0 0.0
    %470 = vmatpush1.msra.mxu0 0.0
    %471 = vmatprep.subr.mxu0 0.0
    %472 = vmatpush1.msra.mxu0 0.0
    %473 = vmatprep.subr.mxu0 0.0
    %474 = vmatpush1.msra.mxu0 0.0
    %475 = vmatprep.subr.mxu0 0.0
    %476 = vmatpush1.msra.mxu0 0.0
    %477 = vmatprep.subr.mxu0 0.0
    %478 = vmatpush1.msra.mxu0 0.0
    %479 = vmatprep.subr.mxu0 0.0
    %480 = vmatpush1.msra.mxu0 0.0
    %481 = vmatprep.subr.mxu0 0.0
    %482 = vmatpush1.msra.mxu0 0.0
    %483 = vmatprep.subr.mxu0 0.0
    %484 = vmatpush1.msra.mxu0 0.0
    %485 = vmatprep.subr.mxu0 0.0
    %486 = vmatpush1.msra.mxu0 0.0
    %487 = vmatprep.subr.mxu0 0.0
    %488 = vmatpush1.msra.mxu0 0.0
    %489 = vmatprep.subr.mxu0 0.0
    %490 = vmatpush1.msra.mxu0 0.0
    %491 = vmatprep.mubr.f32.mxu0 0.0
    %492 = vmatmul.mubr.f32.gmra.mrb[0].mxu0 %v196
    %v493 = vpop.f32.mrb[0].mxu0
    %v494 = vadd.f32 0.0, %v493
    %v495 = vpop.f32.mrb[0].mxu0
    %496 = vdwg.mxu0
    %v497 = vadd.f32 %v420, %v494
    %vm498 = vcmask 130048
    %v499 = vsel %vm498, %v270, 0.0
    %500 = vadd.xlane.f32.xlu0 %v499
    %v501 = vpop.xlane.xlu0 %500
    %v502 = vadd.f32 %v501, 0.0
    %v503 = vsel %vm498, %v497, 0.0
    %504 = vadd.xlane.f32.xlu0 %v503
    %v505 = vpop.xlane.xlu0 %504
    %v506 = vadd.f32 %v502, %v505
    %v507 = vmul.f32 %v506, 0.03125
    %v508 = vsub.f32 %v270, %v507
    %v509 = vmul.f32 %v508, %v508
    %v510 = vsel %vm498, %v509, 0.0
    %511 = vadd.xlane.f32.xlu0 %v510
    %v512 = vpop.xlane.xlu0 %511
    %v513 = vadd.f32 %v512, 0.0
    %v514 = vsub.f32 %v497, %v507
    %v515 = vmul.f32 %v514, %v514
    %v516 = vsel %vm498, %v515, 0.0
    %517 = vadd.xlane.f32.xlu0 %v516
    %v518 = vpop.xlane.xlu0 %517
    %v519 = vadd.f32 %v513, %v518
    %v520 = vmul.f32 %v519, 0.03125
    %v521 = vld [vmem:[%s2] sm:$0xff]
    %v522 = vadd.f32 %v520, 1e-05
    %v523 = vrsqrt.pop %v522
    %v524 = vmul.f32 %v521, %v523
    %s525 = scalar_lea.vmem %s2, 8
    %v526 = vld [vmem:[%s525] sm:$0xff]
    %528 = vset.pattern.permute.xlu0 0
    %529 = vperm.xlu0 %528, %v524
    %v530 = vpop.permute.xlu0 %529
    %v532 = vmul.f32 %v508, %v530
    %534 = vset.pattern.permute.xlu0 0
    %535 = vperm.xlu0 %534, %v526
    %v536 = vpop.permute.xlu0 %535
    %v538 = vadd.f32 %v532, %v536
    %539 = vst.msk [vmem:[#allocation2] sm:$0xff] %vm498, %v538
    %v540 = vmul.f32 %v514, %v530
    %v541 = vadd.f32 %v540, %v536
    %s542 = scalar_lea.vmem [#allocation2], 8
    %543 = vst.msk [vmem:[%s542] sm:$0xff] %vm498, %v541
    // Predicated region
    $region14: #{relu_conv_bn.1} parent=1 // pred_check
      _
    $region15: #{relu_conv_bn.1} parent=1 // pred_check_branch
      %545 = sbr.rel (0) target = $region17
    $region16: #{relu_conv_bn.1} parent=1 // pred_region
      %s547 = ssub.s32 256, 256
      %548 = vsyncadd [#allocation3], %s547
      %s549 = sshll.u32 [#allocation2], 4
      %s550 = int_to_ptr.vmem [resolvable:$true] %s549
      %555 = dma.vmem_to_hbm [thread:$0]  %s550, 256, %s3, [#allocation3], 128, 128, 8
    $region17: #{relu_conv_bn.1} parent=1 // pred_fallthru
      _
    // Predicated region
    $region18: #{relu_conv_bn.1} parent=1 // pred_check
      _
    $region19: #{relu_conv_bn.1} parent=1 // pred_check_branch
      %557 = sbr.rel (0) target = $region21
    $region20: #{relu_conv_bn.1} parent=1 // pred_region
      %558 = dma.done [#allocation3], 256
    $region21: #{relu_conv_bn.1} parent=1 // pred_fallthru
      _
    %559 = vsyncpa [#allocation3], 1

</llo_original>
